<compile_context>
chip_gen: v7x
topology: tpu7x:2x2x1
jax: 0.10.0
libtpu: 0.0.40
codegen_flags: <defaults>
</compile_context>

<pallas_src>
import jax
import jax.numpy as jnp
from jax import lax
from jax.experimental import pallas as pl
from jax.experimental.pallas import tpu as pltpu

_MIB = 1 << 20


def _round_up(x, m):
    return ((x + m - 1) // m) * m


# ---------------------------------------------------------------------------
# Kernels
# ---------------------------------------------------------------------------
def _linear_kernel(x_ref, w_ref, b_ref, o_ref):
    # x_ref: (TB, In); w_ref: (Out, In) PyTorch layout (used as stored);
    # b_ref: (1, Out); o_ref: (TB, Out).
    # Contract x dim 1 against w dim 1 (trans-B) -> y = x @ w.T on the MXU.
    acc = lax.dot_general(
        x_ref[...],
        w_ref[...],
        dimension_numbers=(((1,), (1,)), ((), ())),
        preferred_element_type=jnp.float32,
    )
    o_ref[...] = (acc + b_ref[...]).astype(o_ref.dtype)


def _linear_mnk_kernel(x_ref, w_ref, b_ref, o_ref, acc_ref):
    # Large-weight path. grid = (M, N, K); K (reduction) is the last axis.
    k = pl.program_id(2)

    @pl.when(k == 0)
    def _():
        acc_ref[...] = jnp.zeros_like(acc_ref)

    acc_ref[...] += lax.dot_general(
        x_ref[...],
        w_ref[...],
        dimension_numbers=(((1,), (1,)), ((), ())),
        preferred_element_type=jnp.float32,
    )

    @pl.when(k == pl.num_programs(2) - 1)
    def _():
        o_ref[...] = (acc_ref[...] + b_ref[...]).astype(o_ref.dtype)


# ---------------------------------------------------------------------------
# Wrapper
# ---------------------------------------------------------------------------
def _cost(B, in_size, out_size, itemsize):
    return pl.CostEstimate(
        flops=2 * B * in_size * out_size,
        transcendentals=0,
        bytes_accessed=itemsize
        * (B * in_size + out_size * in_size + out_size + B * out_size),
    )


def _vmem_limit(required_bytes):
    # Lift the default scoped-VMEM limit (16 MiB v5e / 32 MiB v6e,v7x) with
    # ~50% headroom for compiler-internal scratch; stay under physical VMEM.
    return int(min(max(int(required_bytes * 1.5), 32 * _MIB), 100 * _MIB))


def _pick_tile(dim, candidates=(512, 256, 128)):
    for c in candidates:
        if dim % c == 0:
            return c
    return None


def _linear_forward_mnk(x, weight, b2, *, batch_tile):
    """M/N/K-tiled path for weights too large to pin resident in VMEM."""
    B, in_size = x.shape
    out_size = weight.shape[0]
    itemsize = x.dtype.itemsize

    # The K (reduction) axis must tile exactly: padded elements of a partial
    # K block would pollute valid outputs.  (Ragged M/N are safe: those
    # output rows/cols are masked on writeback.)
    tk = _pick_tile(in_size)
    tn = _pick_tile(out_size)
    if tk is None or tn is None:
        return None  # caller falls back to the resident-weight path

    tm = max(8, (min(256, B) // 8) * 8) if B >= 8 else B

    working = itemsize * (
        2 * tm * tk + 2 * tn * tk + 2 * tm * tn + tn + tm * tn
    )
    grid = (pl.cdiv(B, tm), out_size // tn, in_size // tk)
    return pl.pallas_call(
        _linear_mnk_kernel,
        out_shape=jax.ShapeDtypeStruct((B, out_size), x.dtype),
        grid_spec=pltpu.PrefetchScalarGridSpec(
            num_scalar_prefetch=0,
            grid=grid,
            in_specs=[
                pl.BlockSpec((tm, tk), lambda i, j, k: (i, k)),
                pl.BlockSpec((tn, tk), lambda i, j, k: (j, k)),
                pl.BlockSpec((1, tn), lambda i, j, k: (0, j)),
            ],
            out_specs=pl.BlockSpec((tm, tn), lambda i, j, k: (i, j)),
            scratch_shapes=[pltpu.VMEM((tm, tn), jnp.float32)],
        ),
        compiler_params=pltpu.CompilerParams(
            dimension_semantics=("parallel", "parallel", "arbitrary"),
            vmem_limit_bytes=_vmem_limit(working),
        ),
        cost_estimate=_cost(B, in_size, out_size, itemsize),
    )(x, weight, b2)


def linear_forward(x, weight, bias, *, batch_tile=512,
                   weight_resident_limit_bytes=24 * _MIB):
    """Pallas equivalent of torch.nn.Linear: y = x @ weight.T + bias.

    x:      (B, inputSize)            float32
    weight: (outputSize, inputSize)   float32  (PyTorch convention, as-is)
    bias:   (outputSize,)             float32
    """
    B, in_size = x.shape
    out_size = weight.shape[0]
    itemsize = x.dtype.itemsize
    b2 = bias.reshape(1, out_size)  # 2-D -> TPU-friendly (sublane, lane)

    w_bytes = out_size * in_size * itemsize
    bias_bytes = out_size * itemsize

    # ---- Path A: tiny batch -- single invocation, everything in VMEM, no
    # grid / pipelining machinery (pure overhead at these shapes).
    small_bytes = (B * in_size + B * out_size) * itemsize + w_bytes + bias_bytes
    if B <= 256 and small_bytes <= 32 * _MIB:
        return pl.pallas_call(
            _linear_kernel,
            out_shape=jax.ShapeDtypeStruct((B, out_size), x.dtype),
            in_specs=[
                pl.BlockSpec(memory_space=pltpu.MemorySpace.VMEM),
                pl.BlockSpec(memory_space=pltpu.MemorySpace.VMEM),
                pl.BlockSpec(memory_space=pltpu.MemorySpace.VMEM),
            ],
            out_specs=pl.BlockSpec(memory_space=pltpu.MemorySpace.VMEM),
            compiler_params=pltpu.CompilerParams(
                vmem_limit_bytes=_vmem_limit(small_bytes)),
            cost_estimate=_cost(B, in_size, out_size, itemsize),
        )(x, weight, b2)

    # ---- Path C: weight too big to keep resident -> M/N/K tiling with an
    # f32 accumulator (needed on v7x's 64 MiB VMEM for very large layers).
    if w_bytes > weight_resident_limit_bytes:
        out = _linear_forward_mnk(x, weight, b2, batch_tile=batch_tile)
        if out is not None:
            return out
        # else: fall through to the resident path with a raised VMEM limit.

    # ---- Path B: batch-tiled; weight + bias stay resident across the grid.
    # TODO(synk): for out_size < 128 on this path, repack the output into a
    # lane-dense (>=128) slab and reshape in the wrapper to avoid masked
    # vst.msk partial stores.
    bt = (min(batch_tile, B) // 8) * 8 if B >= 8 else B
    if B > 256 and B <= 2 * bt:
        # Guarantee >= 2 grid steps for mid-size batches so the "parallel"
        # batch axis gives both v7x TensorCores work.
        bt = max(128, _round_up(pl.cdiv(B, 2), 8))

    def working_set(t):
        # weight + bias single-buffered, x / out tiles double-buffered.
        return (w_bytes + bias_bytes
                + 2 * t * in_size * itemsize
                + 2 * t * out_size * itemsize)

    budget = 48 * _MIB  # conservative vs. v7x's 64 MiB physical VMEM
    while working_set(bt) > budget and bt > 128:
        bt = max(128, _round_up(bt // 2, 8))

    grid = (pl.cdiv(B, bt),)
    return pl.pallas_call(
        _linear_kernel,
        out_shape=jax.ShapeDtypeStruct((B, out_size), x.dtype),
        grid_spec=pl.GridSpec(
            grid=grid,
            in_specs=[
                pl.BlockSpec((bt, in_size), lambda i: (i, 0)),
                # Pinned blocks (index_map constant): single-buffered so the
                # weight is not needlessly duplicated in VMEM.
                pl.BlockSpec((out_size, in_size), lambda i: (0, 0),
                             pipeline_mode=pl.Buffered(1)),
                pl.BlockSpec((1, out_size), lambda i: (0, 0),
                             pipeline_mode=pl.Buffered(1)),
            ],
            out_specs=pl.BlockSpec((bt, out_size), lambda i: (i, 0)),
        ),
        compiler_params=pltpu.CompilerParams(
            dimension_semantics=("parallel",),
            vmem_limit_bytes=_vmem_limit(working_set(bt)),
        ),
        cost_estimate=_cost(B, in_size, out_size, itemsize),
    )(x, weight, b2)


# ---------------------------------------------------------------------------
# Self-test
# ---------------------------------------------------------------------------
def _make_linear_params(key, in_size, out_size):
    # nn.Linear-style init: uniform(-1/sqrt(in), 1/sqrt(in)).
    kw, kb = jax.random.split(key)
    bound = 1.0 / jnp.sqrt(jnp.float32(in_size))
    weight = jax.random.uniform(
        kw, (out_size, in_size), minval=-bound, maxval=bound, dtype=jnp.float32)
    bias = jax.random.uniform(
        kb, (out_size,), minval=-bound, maxval=bound, dtype=jnp.float32)
    return weight, bias


def _ref(x, w, b):
    return jnp.dot(x, w.T, precision=lax.Precision.HIGHEST) + b


if __name__ == "__main__":
    key = jax.random.PRNGKey(0)
    keys = jax.random.split(key, 8)

    # 1) Small case (module-spec shapes): gridless whole-array-in-VMEM path.
    B, D_in, D_out = 8, 32, 16
    x = jax.random.normal(keys[0], (B, D_in), dtype=jnp.float32)
    w, b = _make_linear_params(keys[1], D_in, D_out)
    out = jax.block_until_ready(linear_forward(x, w, b))
    assert out.shape == (B, D_out)
    assert jnp.allclose(out, _ref(x, w, b), atol=1e-5, rtol=1e-5)

    # 2) Mid batch: batch-tiled, weight-resident path (2 "parallel" steps).
    B2, Din2, Dout2 = 512, 128, 128
    x2 = jax.random.normal(keys[2], (B2, Din2), dtype=jnp.float32)
    w2, b2 = _make_linear_params(keys[3], Din2, Dout2)
    out2 = jax.block_until_ready(linear_forward(x2, w2, b2))
    assert out2.shape == (B2, Dout2)
    assert jnp.allclose(out2, _ref(x2, w2, b2), atol=1e-4, rtol=1e-4)

    # 3) Ragged batch (B not a multiple of the tile): masked partial block.
    B3, Din3, Dout3 = 700, 256, 128
    x3 = jax.random.normal(keys[4], (B3, Din3), dtype=jnp.float32)
    w3, b3 = _make_linear_params(keys[5], Din3, Dout3)
    out3 = jax.block_until_ready(linear_forward(x3, w3, b3))
    assert out3.shape == (B3, Dout3)
    assert jnp.allclose(out3, _ref(x3, w3, b3), atol=1e-4, rtol=1e-4)

    # 4) Force the large-weight M/N/K path (accumulator + pl.when finalize).
    B4, Din4, Dout4 = 384, 1024, 512
    x4 = jax.random.normal(keys[6], (B4, Din4), dtype=jnp.float32)
    w4, b4 = _make_linear_params(keys[7], Din4, Dout4)
    out4 = jax.block_until_ready(
        linear_forward(x4, w4, b4, weight_resident_limit_bytes=1 * _MIB))
    assert out4.shape == (B4, Dout4)
    assert jnp.allclose(out4, _ref(x4, w4, b4), atol=1e-3, rtol=1e-3)

    print("KERNEL_OK")
</pallas_src>

<mosaic_0001>
module attributes {stable_mosaic.version = 11 : i64} {
  func.func @_linear_kernel(%arg0: memref<8x32xf32, #tpu.memory_space<vmem>>, %arg1: memref<16x32xf32, #tpu.memory_space<vmem>>, %arg2: memref<1x16xf32, #tpu.memory_space<vmem>>, %arg3: memref<8x16xf32, #tpu.memory_space<vmem>>) attributes {dimension_semantics = [], scalar_prefetch = 0 : i64, scratch_operands = 0 : i64, tpu.core_type = #tpu.core_type<tc>} {
    %c0 = arith.constant 0 : index
    %c0_0 = arith.constant 0 : index
    %0 = vector.load %arg0[%c0, %c0_0] : memref<8x32xf32, #tpu.memory_space<vmem>>, vector<8x32xf32>
    %c0_1 = arith.constant 0 : index
    %c0_2 = arith.constant 0 : index
    %1 = vector.load %arg1[%c0_1, %c0_2] : memref<16x32xf32, #tpu.memory_space<vmem>>, vector<16x32xf32>
    %cst = arith.constant dense<0.000000e+00> : vector<8x16xf32>
    %2 = tpu.matmul %0, %1, %cst {dimension_numbers = #tpu.dot_dimension_numbers<[1], [1], [0], [0], [0, 0, 1, 0], [], []>} : vector<8x32xf32>, vector<16x32xf32>, vector<8x16xf32> -> vector<8x16xf32>
    %c0_3 = arith.constant 0 : index
    %c0_4 = arith.constant 0 : index
    %3 = vector.load %arg2[%c0_3, %c0_4] : memref<1x16xf32, #tpu.memory_space<vmem>>, vector<1x16xf32>
    %4 = vector.broadcast %3 : vector<1x16xf32> to vector<8x16xf32>
    %5 = arith.addf %2, %4 : vector<8x16xf32>
    %c0_5 = arith.constant 0 : index
    %c0_6 = arith.constant 0 : index
    %6 = vector.load %arg3[%c0_5, %c0_6] : memref<8x16xf32, #tpu.memory_space<vmem>>, vector<8x16xf32>
    tpu.vector_store %arg3[%c0_5, %c0_6], %5 {strides = array<i32>} : memref<8x16xf32, #tpu.memory_space<vmem>>, vector<8x16xf32>,
    return
  }
}

</mosaic_0001>

<llo_original>
// kernel: tpu_custom_call.1
$region0: #{tpu_custom_call.1}
  #allocation0 [shape = 'u32[]', space=smem, size = 0x4, offset = 0x4, fixed_abs, tag = 'smem constant byte address 0x4 - core index']
  #allocation1 [shape = 'u32[144,128]{1,0:T(1,128)}', space=vmem, size = 0x12000, scoped, tag = 'internal scratch']
  %s0 = inlined_call_operand.hbm [shape: f32[8,32], index: 0, kind: input, shape index: {}]
  %s1 = inlined_call_operand.hbm [shape: f32[16,32], index: 1, kind: input, shape index: {}]
  %s2 = inlined_call_operand.vmem [shape: f32[1,16], index: 2, kind: input, shape index: {}]
  %s3 = inlined_call_operand.hbm [shape: f32[8,16], index: 3, kind: output, shape index: {}]
  %s4 = sld [smem:[#allocation0]]
  $region30: #{tpu_custom_call.1} parent=0
    _
  %s6 = ssub.s32 1, %s4
  %s7 = scalar_select 0, %s6, %s4
  $region1: #{tpu_custom_call.1} parent=0
    #allocation2 [shape = 'u8[4096]{0}', space=vmem, size = 0x1000, scoped, tag = 'input window, operand 0, single buffered']
    #allocation3 [shape = 's32[1]{0}', space=sflag, size = 0x4, scoped, tag = 'scoped memory for tpu_custom_call.1']
    #allocation4 [shape = 's32[1]{0}', space=sflag, size = 0x4, scoped, tag = 'scoped memory for tpu_custom_call.1']
    #allocation5 [shape = 'u8[8192]{0}', space=vmem, size = 0x2000, scoped, tag = 'input window, operand 1, single buffered']
    #allocation6 [shape = 's32[1]{0}', space=sflag, size = 0x4, scoped, tag = 'scoped memory for tpu_custom_call.1']
    #allocation7 [shape = 'u8[4096]{0}', space=vmem, size = 0x1000, scoped, tag = 'output window, operand 0, single buffered']
    %8 = vsyncpa [#allocation3], 0
    %9 = vsyncpa [#allocation6], 0
    %10 = vsyncpa [#allocation4], 0
    // Predicated region
    $region2: #{tpu_custom_call.1} parent=1 // pred_check
      _
    $region3: #{tpu_custom_call.1} parent=1 // pred_check_branch
      %12 = sbr.rel (0) target = $region5
    $region4: #{tpu_custom_call.1} parent=1 // pred_region
      %s14 = ssub.s32 128, 128
      %15 = vsyncadd [#allocation3], %s14
      %s17 = sshll.u32 [#allocation2], 4
      %s18 = int_to_ptr.vmem [resolvable:$true] %s17
      %20 = dma.hbm_to_vmem [thread:$0]  %s0, 128, %s18, [#allocation3]
    $region5: #{tpu_custom_call.1} parent=1 // pred_fallthru
      _
    // Predicated region
    $region6: #{tpu_custom_call.1} parent=1 // pred_check
      _
    $region7: #{tpu_custom_call.1} parent=1 // pred_check_branch
      %22 = sbr.rel (0) target = $region9
    $region8: #{tpu_custom_call.1} parent=1 // pred_region
      %s24 = ssub.s32 256, 256
      %25 = vsyncadd [#allocation6], %s24
      %s26 = sshll.u32 [#allocation5], 4
      %s27 = int_to_ptr.vmem [resolvable:$true] %s26
      %32 = dma.hbm_to_vmem [thread:$0]  %s1, 256, %s27, [#allocation6], 128, 128, 8
    $region9: #{tpu_custom_call.1} parent=1 // pred_fallthru
      _
    // Predicated region
    $region10: #{tpu_custom_call.1} parent=1 // pred_check
      _
    $region11: #{tpu_custom_call.1} parent=1 // pred_check_branch
      %34 = sbr.rel (0) target = $region13
    $region12: #{tpu_custom_call.1} parent=1 // pred_region
      _
    $region13: #{tpu_custom_call.1} parent=1 // pred_fallthru
      _
    // Predicated region
    $region14: #{tpu_custom_call.1} parent=1 // pred_check
      _
    $region15: #{tpu_custom_call.1} parent=1 // pred_check_branch
      %36 = sbr.rel (0) target = $region17
    $region16: #{tpu_custom_call.1} parent=1 // pred_region
      %37 = dma.done [#allocation3], 128
    $region17: #{tpu_custom_call.1} parent=1 // pred_fallthru
      _
    // Predicated region
    $region18: #{tpu_custom_call.1} parent=1 // pred_check
      _
    $region19: #{tpu_custom_call.1} parent=1 // pred_check_branch
      %39 = sbr.rel (0) target = $region21
    $region20: #{tpu_custom_call.1} parent=1 // pred_region
      %40 = dma.done [#allocation6], 256
    $region21: #{tpu_custom_call.1} parent=1 // pred_fallthru
      _
    %v41 = vld [vmem:[#allocation2] sm:$0xff]
    %v42 = vld [vmem:[#allocation5] sm:$0xff]
    %v43 = vld [vmem:[#allocation5 + $0x8] sm:$0xff]
    %v44 = vld [vmem:[%s2] sm:$0x1]
    %v46 = vlaneseq
    %v47 = vshrl.u32 %v46, 7
    %v48 = vsub.s32 0, %v47
    %v49 = vrot.slane %v44, %v48
    %vm51 = vcmask 261120
    %v53 = vsel %vm51, %v41, 0
    %v56 = vsel %vm51, %v42, 0
    %v59 = vsel %vm51, %v43, 0
    %61 = vmatprep.subr.mxu0 0.0
    %62 = vmatpush1.xpose.msra.mxu0 %v56
    %63 = vmatprep.subr.mxu0 0.0
    %64 = vmatpush1.xpose.msra.mxu0 %v59
    %65 = vmatprep.subr.mxu0 0.0
    %66 = vmatpush1.xpose.msra.mxu0 0.0
    %67 = vmatprep.subr.mxu0 0.0
    %68 = vmatpush1.xpose.msra.mxu0 0.0
    %69 = vmatprep.subr.mxu0 0.0
    %70 = vmatpush1.xpose.msra.mxu0 0.0
    %71 = vmatprep.subr.mxu0 0.0
    %72 = vmatpush1.xpose.msra.mxu0 0.0
    %73 = vmatprep.subr.mxu0 0.0
    %74 = vmatpush1.xpose.msra.mxu0 0.0
    %75 = vmatprep.subr.mxu0 0.0
    %76 = vmatpush1.xpose.msra.mxu0 0.0
    %77 = vmatprep.subr.mxu0 0.0
    %78 = vmatpush1.xpose.msra.mxu0 0.0
    %79 = vmatprep.subr.mxu0 0.0
    %80 = vmatpush1.xpose.msra.mxu0 0.0
    %81 = vmatprep.subr.mxu0 0.0
    %82 = vmatpush1.xpose.msra.mxu0 0.0
    %83 = vmatprep.subr.mxu0 0.0
    %84 = vmatpush1.xpose.msra.mxu0 0.0
    %85 = vmatprep.subr.mxu0 0.0
    %86 = vmatpush1.xpose.msra.mxu0 0.0
    %87 = vmatprep.subr.mxu0 0.0
    %88 = vmatpush1.xpose.msra.mxu0 0.0
    %89 = vmatprep.subr.mxu0 0.0
    %90 = vmatpush1.xpose.msra.mxu0 0.0
    %91 = vmatprep.subr.mxu0 0.0
    %92 = vmatpush1.xpose.msra.mxu0 0.0
    %93 = vmatprep.subr.mxu0 0.0
    %94 = vmatpush1.xpose.msra.mxu0 0.0
    %95 = vmatprep.subr.mxu0 0.0
    %96 = vmatpush1.xpose.msra.mxu0 0.0
    %97 = vmatprep.subr.mxu0 0.0
    %98 = vmatpush1.xpose.msra.mxu0 0.0
    %99 = vmatprep.subr.mxu0 0.0
    %100 = vmatpush1.xpose.msra.mxu0 0.0
    %101 = vmatprep.subr.mxu0 0.0
    %102 = vmatpush1.xpose.msra.mxu0 0.0
    %103 = vmatprep.subr.mxu0 0.0
    %104 = vmatpush1.xpose.msra.mxu0 0.0
    %105 = vmatprep.subr.mxu0 0.0
    %106 = vmatpush1.xpose.msra.mxu0 0.0
    %107 = vmatprep.subr.mxu0 0.0
    %108 = vmatpush1.xpose.msra.mxu0 0.0
    %109 = vmatprep.subr.mxu0 0.0
    %110 = vmatpush1.xpose.msra.mxu0 0.0
    %111 = vmatprep.subr.mxu0 0.0
    %112 = vmatpush1.xpose.msra.mxu0 0.0
    %113 = vmatprep.subr.mxu0 0.0
    %114 = vmatpush1.xpose.msra.mxu0 0.0
    %115 = vmatprep.subr.mxu0 0.0
    %116 = vmatpush1.xpose.msra.mxu0 0.0
    %117 = vmatprep.subr.mxu0 0.0
    %118 = vmatpush1.xpose.msra.mxu0 0.0
    %119 = vmatprep.subr.mxu0 0.0
    %120 = vmatpush1.xpose.msra.mxu0 0.0
    %121 = vmatprep.subr.mxu0 0.0
    %122 = vmatpush1.xpose.msra.mxu0 0.0
    %123 = vmatprep.subr.mxu0 0.0
    %124 = vmatpush1.xpose.msra.mxu0 0.0
    %125 = vmatprep.mubr.f32.mxu0 0.0
    %126 = vmatmul.mubr.f32.gmra.mrb[0].mxu0 %v53
    %v127 = vpop.f32.mrb[0].mxu0
    %v128 = vadd.f32 %v49, %v127
    %v129 = vpop.f32.mrb[0].mxu0
    %130 = vdwg.mxu0
    %vm131 = vcmask 130048
    %132 = vst.msk [vmem:[#allocation7] sm:$0xff] %vm131, %v128
    // Predicated region
    $region22: #{tpu_custom_call.1} parent=1 // pred_check
      _
    $region23: #{tpu_custom_call.1} parent=1 // pred_check_branch
      %134 = sbr.rel (0) target = $region25
    $region24: #{tpu_custom_call.1} parent=1 // pred_region
      %s136 = ssub.s32 128, 128
      %137 = vsyncadd [#allocation4], %s136
      %s139 = sshll.u32 [#allocation7], 4
      %s140 = int_to_ptr.vmem [resolvable:$true] %s139
      %142 = dma.vmem_to_hbm [thread:$0]  %s140, 128, %s3, [#allocation4]
    $region25: #{tpu_custom_call.1} parent=1 // pred_fallthru
      _
    // Predicated region
    $region26: #{tpu_custom_call.1} parent=1 // pred_check
      _
    $region27: #{tpu_custom_call.1} parent=1 // pred_check_branch
      %144 = sbr.rel (0) target = $region29
    $region28: #{tpu_custom_call.1} parent=1 // pred_region
      %145 = dma.done [#allocation4], 128
    $region29: #{tpu_custom_call.1} parent=1 // pred_fallthru
      _
    %146 = vsyncpa [#allocation3], 1
    %147 = vsyncpa [#allocation6], 1
    %148 = vsyncpa [#allocation4], 1

</llo_original>
